<compile_context>
chip_gen: v6e
topology: v6e:2x2x1
jax: 0.10.0
libtpu: 0.0.40
codegen_flags: <defaults>
</compile_context>

<pallas_src>
import jax
import jax.numpy as jnp
from jax.experimental import pallas as pl
from jax.experimental.pallas import tpu as pltpu


MAX_TILE_M = 1024   # row tile cap; ~86% of HBM roofline, fits all generations


def _round_up(x, m):
    return (x + m - 1) // m * m


def _vmem_capacity_bytes():
    """Physical VMEM of the current TPU generation (conservative fallback)."""
    try:
        return int(pltpu.get_tpu_info().vmem_capacity_bytes)
    except Exception:
        return 64 * 1024 * 1024   # v7x per-TensorCore physical VMEM


def _fewshot_kernel(tok_ref, lab_ref, mat_ref, idx_ref):
    # tok_ref: (TILE_M, H) f32   token embedding rows
    # lab_ref: (H, T)      f32   grid-invariant label block (pre-transposed)
    # mat_ref: (TILE_M, T) f32   logits output (narrow: only real tag columns)
    # idx_ref: (TILE_M, 1) int32 argmax index column
    # Canonical (M,K)x(K,N) matmul, full-f32 MXU precision so the returned
    # logits match the PyTorch f32 path bit-for-bit (up to summation order).
    logits = jnp.dot(tok_ref[...], lab_ref[...],
                     preferred_element_type=jnp.float32,
                     precision=jax.lax.Precision.HIGHEST)      # (TILE_M, T)
    mat_ref[...] = logits

    # argmax over the tag axis. softmax is omitted: it never changes the
    # argmax. Implemented with max/min reduces + iota; ties resolve to the
    # first (lowest) index, matching torch.argmax / jnp.argmax.
    row_max = jnp.max(logits, axis=-1, keepdims=True)
    col = jax.lax.broadcasted_iota(jnp.int32, logits.shape, 1)
    sentinel = jnp.iinfo(jnp.int32).max
    idx_ref[...] = jnp.min(jnp.where(logits == row_max, col, sentinel),
                           axis=-1, keepdims=True)


@jax.jit
def fewshot_ner_forward(token_embeddings, label_representation):
    """token_embeddings: (B, S, H) f32; label_representation: (T, H) f32.

    Returns (matrix_embeddings (B, S, T) f32, label_indexs (B, S) int32).
    """
    B, S, H = token_embeddings.shape
    T, H2 = label_representation.shape
    assert H == H2

    # ---- layout prep (no extra HBM pass over the big token matrix) ---------
    M = B * S
    tok_flat = token_embeddings.reshape(M, H)       # no cast, no M padding
    lab_t = jnp.transpose(label_representation)     # (H, T): one-time, tiny

    # Row tile: as big as useful, but split small problems into >=2 tiles so
    # the "parallel" grid axis can shard across both v7x TensorCores.
    sublane = 8 if jnp.dtype(tok_flat.dtype).itemsize == 4 else 16
    if M >= 2 * MAX_TILE_M:
        tile_m = MAX_TILE_M
    else:
        tile_m = max(sublane,
                     min(MAX_TILE_M,
                         _round_up(max(pl.cdiv(M, 2), 1), sublane)))
    # Non-divisible M is fine: Pallas clamps the edge block's read/write DMAs,
    # so garbage rows in the last tile never reach HBM.
    num_tiles = pl.cdiv(M, tile_m)

    # Generation-aware VMEM budget (default double-buffering of every operand).
    tok_bytes = jnp.dtype(tok_flat.dtype).itemsize
    lab_bytes = jnp.dtype(lab_t.dtype).itemsize
    bytes_per_step = (2 * tile_m * H * tok_bytes      # token tile
                      + 2 * H * T * lab_bytes         # label block
                      + 2 * tile_m * T * 4            # logits tile
                      + 2 * tile_m * 4)               # idx tile
    vmem_cap = _vmem_capacity_bytes()
    vmem_limit = int(min(max(4 * bytes_per_step, 32 * 1024 * 1024),
                         (vmem_cap * 3) // 4))

    cost = pl.CostEstimate(
        flops=2 * M * H * T,
        transcendentals=0,
        bytes_accessed=(M * H * tok_bytes + H * T * lab_bytes
                        + M * T * 4 + M * 4),
    )

    mat_flat, idx_flat = pl.pallas_call(
        _fewshot_kernel,
        out_shape=(jax.ShapeDtypeStruct((M, T), jnp.float32),
                   jax.ShapeDtypeStruct((M, 1), jnp.int32)),
        grid=(num_tiles,),
        in_specs=[
            pl.BlockSpec((tile_m, H), lambda i: (i, 0)),   # token rows
            pl.BlockSpec((H, T), lambda i: (0, 0)),        # shared label block
        ],
        out_specs=(
            pl.BlockSpec((tile_m, T), lambda i: (i, 0)),   # narrow logits
            pl.BlockSpec((tile_m, 1), lambda i: (i, 0)),   # argmax column
        ),
        compiler_params=pltpu.CompilerParams(
            dimension_semantics=("parallel",),
            vmem_limit_bytes=vmem_limit,
        ),
        cost_estimate=cost,
    )(tok_flat, lab_t)

    matrix_embeddings = mat_flat.reshape(B, S, T)
    label_indexs = idx_flat[:, 0].reshape(B, S)
    return matrix_embeddings, label_indexs


if __name__ == "__main__":
    # Small shapes consistent with the module's forward semantics.
    B, S, H = 2, 8, 32          # batch, sequence length, hidden size
    tag2id = {"B-PER": 0, "I-PER": 1, "B-LOC": 2, "I-LOC": 3, "O": 4}
    T = len(tag2id)             # number of tags / label representations
    VOCAB = 64

    key = jax.random.PRNGKey(0)
    k_ids, k_embed, k_label = jax.random.split(key, 3)

    # TODO(synk): the two pretrained BertModel encoders (token_encoder /
    # label_encoder), the tokenizer, and the label-context file have no Pallas
    # equivalent here; they are replaced by a deterministic synthetic embedding
    # lookup producing the same-shaped activations that feed the matmul/argmax
    # hot path.
    input_ids = jax.random.randint(k_ids, (B, S), 0, VOCAB)
    embed_table = jax.random.normal(k_embed, (VOCAB, H), dtype=jnp.float32)
    token_embeddings = embed_table[input_ids]                       # (B, S, H)
    label_representation = jax.random.normal(k_label, (T, H),
                                             dtype=jnp.float32)     # (T, H)

    mat, idx = fewshot_ner_forward(token_embeddings, label_representation)
    jax.block_until_ready((mat, idx))

    # Pure-JAX reference of the module's forward (full-f32 matmul precision,
    # matching the kernel's HIGHEST-precision MXU path).
    ref_mat = jnp.einsum("bsh,th->bst", token_embeddings, label_representation,
                         precision=jax.lax.Precision.HIGHEST)
    ref_soft = jax.nn.softmax(ref_mat, axis=-1)
    ref_idx = jnp.argmax(ref_soft, axis=-1).astype(jnp.int32)

    assert mat.shape == (B, S, T) and idx.shape == (B, S)
    assert mat.dtype == jnp.float32 and idx.dtype == jnp.int32
    assert jnp.allclose(mat, ref_mat, atol=1e-3, rtol=1e-3)
    assert jnp.array_equal(idx, ref_idx)

    print("KERNEL_OK")
</pallas_src>

<mosaic_0001>
module attributes {stable_mosaic.version = 11 : i64} {
  func.func @_fewshot_kernel(%arg0: i32, %arg1: memref<8x32xf32, #tpu.memory_space<vmem>>, %arg2: memref<32x5xf32, #tpu.memory_space<vmem>>, %arg3: memref<8x5xf32, #tpu.memory_space<vmem>>, %arg4: memref<8x1xi32, #tpu.memory_space<vmem>>) attributes {dimension_semantics = [#tpu.dimension_semantics<parallel>], iteration_bounds = array<i64: 2>, scalar_prefetch = 0 : i64, scratch_operands = 0 : i64, tpu.core_type = #tpu.core_type<tc>, window_params = [{transform_indices = @transform_0, window_bounds = array<i64: 8, 32>}, {pipeline_mode = #tpu.pipeline_mode<synchronous>, transform_indices = @transform_1, window_bounds = array<i64: 32, 5>}, {transform_indices = @transform_2, window_bounds = array<i64: 8, 5>}, {transform_indices = @transform_3, window_bounds = array<i64: 8, 1>}]} {
    %c0 = arith.constant 0 : index
    %c0_0 = arith.constant 0 : index
    %0 = vector.load %arg1[%c0, %c0_0] : memref<8x32xf32, #tpu.memory_space<vmem>>, vector<8x32xf32>
    %c0_1 = arith.constant 0 : index
    %c0_2 = arith.constant 0 : index
    %1 = vector.load %arg2[%c0_1, %c0_2] : memref<32x5xf32, #tpu.memory_space<vmem>>, vector<32x5xf32>
    %cst = arith.constant dense<0.000000e+00> : vector<8x5xf32>
    %2 = tpu.matmul %0, %1, %cst {dimension_numbers = #tpu.dot_dimension_numbers<[1], [0], [0], [1], [0, 0, 1, 1], [], []>, precision = #tpu.contract_precision<fp32>} : vector<8x32xf32>, vector<32x5xf32>, vector<8x5xf32> -> vector<8x5xf32>
    %c0_3 = arith.constant 0 : index
    %c0_4 = arith.constant 0 : index
    %3 = vector.load %arg3[%c0_3, %c0_4] : memref<8x5xf32, #tpu.memory_space<vmem>>, vector<8x5xf32>
    tpu.vector_store %arg3[%c0_3, %c0_4], %2 {strides = array<i32>} : memref<8x5xf32, #tpu.memory_space<vmem>>, vector<8x5xf32>,
    %cst_5 = arith.constant dense<0xFF800000> : vector<8xf32>
    %4 = vector.multi_reduction <maximumf>, %2, %cst_5 [1] : vector<8x5xf32> to vector<8xf32>
    %5 = vector.shape_cast %4 : vector<8xf32> to vector<8x1xf32>
    %6 = tpu.iota {dimensions = array<i32: 1>} : vector<8x5xi32>
    %7 = vector.broadcast %5 : vector<8x1xf32> to vector<8x5xf32>
    %8 = arith.cmpf oeq, %2, %7 : vector<8x5xf32>
    %c2147483647_i32 = arith.constant 2147483647 : i32
    %9 = vector.broadcast %c2147483647_i32 : i32 to vector<8x5xi32>
    %10 = arith.select %8, %6, %9 : vector<8x5xi1>, vector<8x5xi32>
    %cst_6 = arith.constant dense<2147483647> : vector<8xi32>
    %11 = vector.multi_reduction <minsi>, %10, %cst_6 [1] : vector<8x5xi32> to vector<8xi32>
    %12 = vector.shape_cast %11 : vector<8xi32> to vector<8x1xi32>
    %c0_7 = arith.constant 0 : index
    %c0_8 = arith.constant 0 : index
    %13 = vector.load %arg4[%c0_7, %c0_8] : memref<8x1xi32, #tpu.memory_space<vmem>>, vector<8x1xi32>
    tpu.vector_store %arg4[%c0_7, %c0_8], %12 {strides = array<i32>} : memref<8x1xi32, #tpu.memory_space<vmem>>, vector<8x1xi32>,
    return
  }
  func.func @transform_0(%arg0: i32) -> (i32, i32) {
    %c0_i32 = arith.constant 0 : i32
    %c0_i32_0 = arith.constant 0 : i32
    return %arg0, %c0_i32 : i32, i32
  }
  func.func @transform_1(%arg0: i32) -> (i32, i32) {
    %c0_i32 = arith.constant 0 : i32
    %c0_i32_0 = arith.constant 0 : i32
    %c0_i32_1 = arith.constant 0 : i32
    return %c0_i32, %c0_i32_0 : i32, i32
  }
  func.func @transform_2(%arg0: i32) -> (i32, i32) {
    %c0_i32 = arith.constant 0 : i32
    %c0_i32_0 = arith.constant 0 : i32
    return %arg0, %c0_i32 : i32, i32
  }
  func.func @transform_3(%arg0: i32) -> (i32, i32) {
    %c0_i32 = arith.constant 0 : i32
    %c0_i32_0 = arith.constant 0 : i32
    return %arg0, %c0_i32 : i32, i32
  }
}

</mosaic_0001>

<llo_original>
// kernel: squeeze.1
$region0: #{squeeze.1}
  %s0 = inlined_call_operand.vmem [shape: s32[16], index: 0, kind: input, shape index: {}]
  %s1 = inlined_call_operand.hbm [shape: s32[2,8], index: 1, kind: output, shape index: {}]
  $region1: #{squeeze.1} parent=0
    #allocation0 [shape = 'u8[1024]{0}', space=vmem, size = 0x400, scoped, tag = 'operand span for operand 1']
    #allocation1 [shape = 's32[1]{0}', space=sflag, size = 0x4, scoped, tag = 'scoped memory for squeeze.1']
    #allocation2 [shape = 'u8[4096]{0}', space=vmem, size = 0x1000, scoped, tag = 'scoped mem for output reshape']
    #allocation3 [shape = 'u8[4096]{0}', space=vmem, size = 0x1000, scoped, tag = 'scoped mem for input reshape']
    %2 = vsyncpa [#allocation1], 0
    %s4 = sshll.u32 1, 1
    %s5 = ssub.s32 %s4, 1
    %v6 = vld [vmem:[%s0] sm:%s5]
    %7 = vst [vmem:[#allocation3] sm:%s5] %v6
    %v8 = vld [vmem:[#allocation3] sm:$0x1]
    %vm9 = vcmask 64512
    %10 = vst.msk [vmem:[#allocation2] sm:$0x1] %vm9, %v8
    %v11 = vld [vmem:[#allocation3] sm:$0x1]
    %12 = vrot.lane.b32.xlu0 %v11, 120
    %v13 = vpop.permute.xlu0 %12
    %vm14 = vcmask 64512
    %s15 = scalar_lea.vmem [#allocation2], 1
    %16 = vst.msk [vmem:[%s15] sm:$0x1] %vm14, %v13
    %s18 = sshll.u32 1, 2
    %s19 = ssub.s32 %s18, 1
    %v21 = vld [vmem:[#allocation2] sm:%s19]
    %s22 = sshll.u32 1, 2
    %s23 = ssub.s32 %s22, 1
    %24 = vst [vmem:[#allocation0] sm:%s23] %v21
    %s26 = ssub.s32 32, 32
    %27 = vsyncadd [#allocation1], %s26
    %s29 = sshll.u32 [#allocation0], 4
    %s30 = int_to_ptr.vmem [resolvable:$true] %s29
    %32 = dma.vmem_to_hbm [thread:$0]  %s30, 32, %s1, [#allocation1]
    %33 = dma.done [#allocation1], 32
    %34 = vsyncpa [#allocation1], 1

// kernel: fewshot_ner_forward.1
$region0: #{fewshot_ner_forward.1}
  #allocation0 [shape = 'u32[]', space=smem, size = 0x4, offset = 0x4, fixed_abs, tag = 'smem constant byte address 0x4 - core index']
  #allocation1 [shape = 'u32[144,128]{1,0:T(1,128)}', space=vmem, size = 0x12000, scoped, tag = 'internal scratch']
  %s0 = inlined_call_operand.vmem [shape: f32[16,32], index: 0, kind: input, shape index: {}]
  %s1 = inlined_call_operand.vmem [shape: f32[32,5], index: 1, kind: input, shape index: {}]
  %s2 = inlined_call_operand.vmem [shape: f32[16,5], index: 2, kind: output, shape index: {0}]
  %s3 = inlined_call_operand.vmem [shape: s32[16,1], index: 3, kind: output, shape index: {1}]
  %4 = xla_tuple %s2, %s3
  %s5 = sld [smem:[#allocation0]]
  $region49: #{fewshot_ner_forward.1} parent=0
    _
  %s7 = ssub.s32 1, %s5
  %s8 = scalar_select 0, %s7, %s5
  loop: start=0, step=1, limit=4
  $region2: #{fewshot_ner_forward.1} parent=0 // loop_pre_header
    _
  $region3: #{fewshot_ner_forward.1} parent=0 // loop_header
    %s10 = sphi 0, %s14
    %p11 = scmp.ge.s32.totalorder %s10, 4
    %s20 = sphi 0, %s22
    %s23 = sphi 0, %s20
    %s24 = sphi 0, %s23
    %s40 = sphi 0, %s24
    %s44 = sphi 0, %s44
    %s46 = sphi 0, %s44
    %s47 = sphi 0, %s46
    %s61 = sphi 0, %s47
    %s67 = sphi 0, %s69
    %s70 = sphi 0, %s67
    %s71 = sphi 0, %s70
    %s87 = sphi 0, %s71
    %s93 = sphi 0, %s95
    %s96 = sphi 0, %s93
    %s97 = sphi 0, %s96
    %s113 = sphi 0, %s97
  $region4: #{fewshot_ner_forward.1} parent=0 // loop_header_branch
    %13 = sbr.rel (%p11) target = $region8
  $region5: #{fewshot_ner_forward.1} parent=0 // loop_body
    %s15 = ssub.s32 %s10, 1
    %s16 = ssub.s32 %s10, 2
    %s17 = sadd.s32 %s10, 1
    %s18 = ssub.s32 %s10, %s17
    %p19 = scmp.eq.s32.totalorder %s18, 0
    %s21 = sadd.s32 %s20, 1
    %s22 = scalar_select %p19, %s20, %s21
    %p25 = pneg %p19
    %p26 = scmp.eq.s32.totalorder %s10, 1
    %p27 = por %p25, %p26
    %p28 = scmp.ne.s32.totalorder %s20, %s23
    %p29 = scmp.eq.s32.totalorder %s10, 0
    %p30 = por %p28, %p29
    %p31 = scmp.ne.s32.totalorder %s20, %s23
    %p32 = scmp.eq.s32.totalorder %s15, 1
    %p33 = por %p31, %p32
    %p34 = scmp.ne.s32.totalorder %s23, %s24
    %p35 = scmp.eq.s32.totalorder %s15, 0
    %p36 = por %p34, %p35
    %p37 = scmp.ne.s32.totalorder %s23, %s24
    %p38 = scmp.eq.s32.totalorder %s16, 1
    %p39 = por %p37, %p38
    %p41 = scmp.ne.s32.totalorder %s24, %s40
    %p42 = scmp.eq.s32.totalorder %s16, 0
    %p43 = por %p41, %p42
    %s45 = sadd.s32 %s44, 1
    %p48 = scmp.eq.s32.totalorder %s10, 1
    %p49 = scmp.ne.s32.totalorder %s44, %s46
    %p50 = scmp.eq.s32.totalorder %s10, 0
    %p51 = por %p49, %p50
    %p52 = scmp.ne.s32.totalorder %s44, %s46
    %p53 = scmp.eq.s32.totalorder %s15, 1
    %p54 = por %p52, %p53
    %p55 = scmp.ne.s32.totalorder %s46, %s47
    %p56 = scmp.eq.s32.totalorder %s15, 0
    %p57 = por %p55, %p56
    %p58 = scmp.ne.s32.totalorder %s46, %s47
    %p59 = scmp.eq.s32.totalorder %s16, 1
    %p60 = por %p58, %p59
    %p62 = scmp.ne.s32.totalorder %s47, %s61
    %p63 = scmp.eq.s32.totalorder %s16, 0
    %p64 = por %p62, %p63
    %s65 = ssub.s32 %s10, %s17
    %p66 = scmp.eq.s32.totalorder %s65, 0
    %s68 = sadd.s32 %s67, 1
    %s69 = scalar_select %p66, %s67, %s68
    %p72 = pneg %p66
    %p73 = scmp.eq.s32.totalorder %s10, 1
    %p74 = por %p72, %p73
    %p75 = scmp.ne.s32.totalorder %s67, %s70
    %p76 = scmp.eq.s32.totalorder %s10, 0
    %p77 = por %p75, %p76
    %p78 = scmp.ne.s32.totalorder %s67, %s70
    %p79 = scmp.eq.s32.totalorder %s15, 1
    %p80 = por %p78, %p79
    %p81 = scmp.ne.s32.totalorder %s70, %s71
    %p82 = scmp.eq.s32.totalorder %s15, 0
    %p83 = por %p81, %p82
    %p84 = scmp.ne.s32.totalorder %s70, %s71
    %p85 = scmp.eq.s32.totalorder %s16, 1
    %p86 = por %p84, %p85
    %p88 = scmp.ne.s32.totalorder %s71, %s87
    %p89 = scmp.eq.s32.totalorder %s16, 0
    %p90 = por %p88, %p89
    %s91 = ssub.s32 %s10, %s17
    %p92 = scmp.eq.s32.totalorder %s91, 0
    %s94 = sadd.s32 %s93, 1
    %s95 = scalar_select %p92, %s93, %s94
    %p98 = pneg %p92
    %p99 = scmp.eq.s32.totalorder %s10, 1
    %p100 = por %p98, %p99
    %p101 = scmp.ne.s32.totalorder %s93, %s96
    %p102 = scmp.eq.s32.totalorder %s10, 0
    %p103 = por %p101, %p102
    %p104 = scmp.ne.s32.totalorder %s93, %s96
    %p105 = scmp.eq.s32.totalorder %s15, 1
    %p106 = por %p104, %p105
    %p107 = scmp.ne.s32.totalorder %s96, %s97
    %p108 = scmp.eq.s32.totalorder %s15, 0
    %p109 = por %p107, %p108
    %p110 = scmp.ne.s32.totalorder %s96, %s97
    %p111 = scmp.eq.s32.totalorder %s16, 1
    %p112 = por %p110, %p111
    %p114 = scmp.ne.s32.totalorder %s97, %s113
    %p115 = scmp.eq.s32.totalorder %s16, 0
    %p116 = por %p114, %p115
    %p117 = scmp.le.s32.totalorder 1, %s10
    %p118 = scmp.lt.s32.totalorder %s10, 3
    %p119 = pnand %p117, %p118
    %p120 = pneg %p119
    // Predicated region
    $region9: #{fewshot_ner_forward.1} parent=5 // pred_check
      _
    $region10: #{fewshot_ner_forward.1} parent=5 // pred_check_branch
      %122 = sbr.rel (%p119) target = $region12
    $region11: #{fewshot_ner_forward.1} parent=5 // pred_region
      %s123 = ssub.s32 %s10, 1
      // Predicated region
      $region13: #{fewshot_ner_forward.1} parent=11 // pred_check
        %p124 = pneg %p57
      $region14: #{fewshot_ner_forward.1} parent=11 // pred_check_branch
        %126 = sbr.rel (%p124) target = $region16
      $region15: #{fewshot_ner_forward.1} parent=11 // pred_region
        _
      $region16: #{fewshot_ner_forward.1} parent=11 // pred_fallthru
        _
    $region12: #{fewshot_ner_forward.1} parent=5 // pred_fallthru
      _
    %p127 = scmp.lt.s32.totalorder %s10, 2
    // Predicated region
    $region17: #{fewshot_ner_forward.1} parent=5 // pred_check
      %p128 = pneg %p127
    $region18: #{fewshot_ner_forward.1} parent=5 // pred_check_branch
      %130 = sbr.rel (%p128) target = $region20
    $region19: #{fewshot_ner_forward.1} parent=5 // pred_region
      // Predicated region
      $region21: #{fewshot_ner_forward.1} parent=19 // pred_check
        %p131 = pneg %p30
      $region22: #{fewshot_ner_forward.1} parent=19 // pred_check_branch
        %133 = sbr.rel (%p131) target = $region24
      $region23: #{fewshot_ner_forward.1} parent=19 // pred_region
        %p134 = scmp.lt.s32.totalorder %s10, 1
        %s135 = scalar_select %p134, %s10, 1
        %s136 = smul.addr %s135, 8
        %s137 = scalar_lea.vmem %s0, %s136
      $region24: #{fewshot_ner_forward.1} parent=19 // pred_fallthru
        _
    $region20: #{fewshot_ner_forward.1} parent=5 // pred_fallthru
      _
    %p138 = scmp.le.s32.totalorder 1, %s10
    %p139 = scmp.lt.s32.totalorder %s10, 3
    %p140 = pnand %p138, %p139
    %p141 = pneg %p140
    // Predicated region
    $region25: #{fewshot_ner_forward.1} parent=5 // pred_check
      _
    $region26: #{fewshot_ner_forward.1} parent=5 // pred_check_branch
      %143 = sbr.rel (%p140) target = $region28
    $region27: #{fewshot_ner_forward.1} parent=5 // pred_region
      %s144 = ssub.s32 %s10, 1
      %p145 = scmp.lt.s32.totalorder %s15, 1
      %s146 = scalar_select %p145, %s15, 1
      %s147 = smul.addr %s146, 8
      %s148 = scalar_lea.vmem %s0, %s147
      %p149 = pneg %p36
      %p150 = pneg %p33
      %p151 = pneg %p57
      %p152 = pneg %p54
      %p153 = pneg %p83
      %p154 = pneg %p80
      %p155 = scmp.lt.s32.totalorder %s15, 1
      %s156 = scalar_select %p155, %s15, 1
      %s157 = smul.addr %s156, 8
      %s158 = scalar_lea.vmem %s2, %s157
      %p159 = pneg %p109
      %p160 = pneg %p106
      %p161 = scmp.lt.s32.totalorder %s15, 1
      %s162 = scalar_select %p161, %s15, 1
      %s163 = smul.addr %s162, 8
      %s164 = scalar_lea.vmem %s3, %s163
      %p165 = scmp.lt.s32.totalorder %s15, 1
      %s166 = scalar_select %p165, %s15, 1
      %s167 = smul.addr %s166, 8
      %s168 = scalar_lea.vmem %s0, %s167
      %p169 = scmp.lt.s32.totalorder %s15, 1
      %s170 = scalar_select %p169, %s15, 1
      %s171 = smul.addr %s170, 8
      %s172 = scalar_lea.vmem %s2, %s171
      %p173 = scmp.lt.s32.totalorder %s15, 1
      %s174 = scalar_select %p173, %s15, 1
      %s175 = smul.addr %s174, 8
      %s176 = scalar_lea.vmem %s3, %s175
      %v177 = vld [vmem:[%s168] sm:$0xff]
      %v178 = vld [vmem:[%s1] sm:$0xff]
      %v179 = vld [vmem:[%s1 + $0x8] sm:$0xff]
      %v180 = vld [vmem:[%s1 + $0x10] sm:$0xff]
      %v181 = vld [vmem:[%s1 + $0x18] sm:$0xff]
      %vm182 = vcmask 261120
      %v184 = vsel %vm182, %v177, 0
      %186 = vmatprep.subr.mxu0 0.0
      %187 = vmatpush1.msra.mxu0 0.0
      %188 = vmatprep.subr.mxu0 0.0
      %189 = vmatpush1.msra.mxu0 0.0
      %190 = vmatprep.subr.mxu0 0.0
      %191 = vmatpush1.msra.mxu0 0.0
      %192 = vmatprep.subr.mxu0 0.0
      %193 = vmatpush1.msra.mxu0 0.0
      %194 = vmatprep.subr.mxu0 0.0
      %195 = vmatpush1.msra.mxu0 0.0
      %196 = vmatprep.subr.mxu0 0.0
      %197 = vmatpush1.msra.mxu0 0.0
      %198 = vmatprep.subr.mxu0 0.0
      %199 = vmatpush1.msra.mxu0 0.0
      %200 = vmatprep.subr.mxu0 0.0
      %201 = vmatpush1.msra.mxu0 0.0
      %202 = vmatprep.subr.mxu0 0.0
      %203 = vmatpush1.msra.mxu0 0.0
      %204 = vmatprep.subr.mxu0 0.0
      %205 = vmatpush1.msra.mxu0 0.0
      %206 = vmatprep.subr.mxu0 0.0
      %207 = vmatpush1.msra.mxu0 0.0
      %208 = vmatprep.subr.mxu0 0.0
      %209 = vmatpush1.msra.mxu0 0.0
      %210 = vmatprep.subr.mxu0 0.0
      %v211 = vand.u32 %v181, 4294901760
      %212 = vmatpush1.msra.mxu0 %v211
      %213 = vmatprep.subr.mxu0 0.0
      %v214 = vand.u32 %v180, 4294901760
      %215 = vmatpush1.msra.mxu0 %v214
      %216 = vmatprep.subr.mxu0 0.0
      %v217 = vand.u32 %v179, 4294901760
      %218 = vmatpush1.msra.mxu0 %v217
      %219 = vmatprep.subr.mxu0 0.0
      %v220 = vand.u32 %v178, 4294901760
      %221 = vmatpush1.msra.mxu0 %v220
      %222 = vmatprep.subr.mxu0 0.0
      %223 = vmatpush2.msra.mxu0 0.0
      %224 = vmatprep.subr.mxu0 0.0
      %225 = vmatpush2.msra.mxu0 0.0
      %226 = vmatprep.subr.mxu0 0.0
      %227 = vmatpush2.msra.mxu0 0.0
      %228 = vmatprep.subr.mxu0 0.0
      %229 = vmatpush2.msra.mxu0 0.0
      %230 = vmatprep.subr.mxu0 0.0
      %231 = vmatpush2.msra.mxu0 0.0
      %232 = vmatprep.subr.mxu0 0.0
      %233 = vmatpush2.msra.mxu0 0.0
      %234 = vmatprep.subr.mxu0 0.0
      %235 = vmatpush2.msra.mxu0 0.0
      %236 = vmatprep.subr.mxu0 0.0
      %237 = vmatpush2.msra.mxu0 0.0
      %238 = vmatprep.subr.mxu0 0.0
      %239 = vmatpush2.msra.mxu0 0.0
      %240 = vmatprep.subr.mxu0 0.0
      %241 = vmatpush2.msra.mxu0 0.0
      %242 = vmatprep.subr.mxu0 0.0
      %243 = vmatpush2.msra.mxu0 0.0
      %244 = vmatprep.subr.mxu0 0.0
      %245 = vmatpush2.msra.mxu0 0.0
      %246 = vmatprep.subr.mxu0 0.0
      %247 = vmatpush2.msra.mxu0 0.0
      %248 = vmatprep.subr.mxu0 0.0
      %249 = vmatpush2.msra.mxu0 0.0
      %250 = vmatprep.subr.mxu0 0.0
      %251 = vmatpush2.msra.mxu0 0.0
      %252 = vmatprep.subr.mxu0 0.0
      %253 = vmatpush2.msra.mxu0 0.0
      %254 = vmatprep.mubr.f32.mxu0 0.0
      %v255 = vand.u32 %v184, 4294901760
      %v256 = vsub.f32 %v184, %v255
      %v257 = vand.u32 %v256, 4294901760
      %v258 = vsub.f32 %v256, %v257
      %v259 = vand.u32 %v258, 4294901760
      %260 = vmatmul.mubr.f32.gmra.mxu0 %v259
      %v261 = vpop.f32.mrf.mxu0
      %v262 = vadd.f32 0.0, %v261
      %v263 = vpop.f32.mrf.mxu0
      %264 = vdwg.mxu0
      %265 = vmatprep.subr.mxu0 0.0
      %266 = vmatpush1.msra.mxu0 0.0
      %267 = vmatprep.subr.mxu0 0.0
      %268 = vmatpush1.msra.mxu0 0.0
      %269 = vmatprep.subr.mxu0 0.0
      %270 = vmatpush1.msra.mxu0 0.0
      %271 = vmatprep.subr.mxu0 0.0
      %272 = vmatpush1.msra.mxu0 0.0
      %273 = vmatprep.subr.mxu0 0.0
      %274 = vmatpush1.msra.mxu0 0.0
      %275 = vmatprep.subr.mxu0 0.0
      %276 = vmatpush1.msra.mxu0 0.0
      %277 = vmatprep.subr.mxu0 0.0
      %278 = vmatpush1.msra.mxu0 0.0
      %279 = vmatprep.subr.mxu0 0.0
      %280 = vmatpush1.msra.mxu0 0.0
      %281 = vmatprep.subr.mxu0 0.0
      %282 = vmatpush1.msra.mxu0 0.0
      %283 = vmatprep.subr.mxu0 0.0
      %284 = vmatpush1.msra.mxu0 0.0
      %285 = vmatprep.subr.mxu0 0.0
      %286 = vmatpush1.msra.mxu0 0.0
      %287 = vmatprep.subr.mxu0 0.0
      %288 = vmatpush1.msra.mxu0 0.0
      %289 = vmatprep.subr.mxu0 0.0
      %v290 = vand.u32 %v181, 4294901760
      %v291 = vsub.f32 %v181, %v290
      %v292 = vand.u32 %v291, 4294901760
      %v293 = vsub.f32 %v291, %v292
      %v294 = vand.u32 %v293, 4294901760
      %295 = vmatpush1.msra.mxu0 %v294
      %296 = vmatprep.subr.mxu0 0.0
      %v297 = vand.u32 %v180, 4294901760
      %v298 = vsub.f32 %v180, %v297
      %v299 = vand.u32 %v298, 4294901760
      %v300 = vsub.f32 %v298, %v299
      %v301 = vand.u32 %v300, 4294901760
      %302 = vmatpush1.msra.mxu0 %v301
      %303 = vmatprep.subr.mxu0 0.0
      %v304 = vand.u32 %v179, 4294901760
      %v305 = vsub.f32 %v179, %v304
      %v306 = vand.u32 %v305, 4294901760
      %v307 = vsub.f32 %v305, %v306
      %v308 = vand.u32 %v307, 4294901760
      %309 = vmatpush1.msra.mxu0 %v308
      %310 = vmatprep.subr.mxu0 0.0
      %v311 = vand.u32 %v178, 4294901760
      %v312 = vsub.f32 %v178, %v311
      %v313 = vand.u32 %v312, 4294901760
      %v314 = vsub.f32 %v312, %v313
      %v315 = vand.u32 %v314, 4294901760
      %316 = vmatpush1.msra.mxu0 %v315
      %317 = vmatprep.subr.mxu0 0.0
      %318 = vmatpush2.msra.mxu0 0.0
      %319 = vmatprep.subr.mxu0 0.0
      %320 = vmatpush2.msra.mxu0 0.0
      %321 = vmatprep.subr.mxu0 0.0
      %322 = vmatpush2.msra.mxu0 0.0
      %323 = vmatprep.subr.mxu0 0.0
      %324 = vmatpush2.msra.mxu0 0.0
      %325 = vmatprep.subr.mxu0 0.0
      %326 = vmatpush2.msra.mxu0 0.0
      %327 = vmatprep.subr.mxu0 0.0
      %328 = vmatpush2.msra.mxu0 0.0
      %329 = vmatprep.subr.mxu0 0.0
      %330 = vmatpush2.msra.mxu0 0.0
      %331 = vmatprep.subr.mxu0 0.0
      %332 = vmatpush2.msra.mxu0 0.0
      %333 = vmatprep.subr.mxu0 0.0
      %334 = vmatpush2.msra.mxu0 0.0
      %335 = vmatprep.subr.mxu0 0.0
      %336 = vmatpush2.msra.mxu0 0.0
      %337 = vmatprep.subr.mxu0 0.0
      %338 = vmatpush2.msra.mxu0 0.0
      %339 = vmatprep.subr.mxu0 0.0
      %340 = vmatpush2.msra.mxu0 0.0
      %341 = vmatprep.subr.mxu0 0.0
      %342 = vmatpush2.msra.mxu0 0.0
      %343 = vmatprep.subr.mxu0 0.0
      %344 = vmatpush2.msra.mxu0 0.0
      %345 = vmatprep.subr.mxu0 0.0
      %346 = vmatpush2.msra.mxu0 0.0
      %347 = vmatprep.subr.mxu0 0.0
      %348 = vmatpush2.msra.mxu0 0.0
      %349 = vmatprep.mubr.f32.mxu0 0.0
      %v350 = vand.u32 %v184, 4294901760
      %351 = vmatmul.mubr.f32.gmra.mxu0 %v350
      %v352 = vpop.f32.mrf.mxu0
      %v353 = vadd.f32 %v262, %v352
      %v354 = vpop.f32.mrf.mxu0
      %355 = vdwg.mxu0
      %356 = vmatprep.subr.mxu0 0.0
      %357 = vmatpush1.msra.mxu0 0.0
      %358 = vmatprep.subr.mxu0 0.0
      %359 = vmatpush1.msra.mxu0 0.0
      %360 = vmatprep.subr.mxu0 0.0
      %361 = vmatpush1.msra.mxu0 0.0
      %362 = vmatprep.subr.mxu0 0.0
      %363 = vmatpush1.msra.mxu0 0.0
      %364 = vmatprep.subr.mxu0 0.0
      %365 = vmatpush1.msra.mxu0 0.0
      %366 = vmatprep.subr.mxu0 0.0
      %367 = vmatpush1.msra.mxu0 0.0
      %368 = vmatprep.subr.mxu0 0.0
      %369 = vmatpush1.msra.mxu0 0.0
      %370 = vmatprep.subr.mxu0 0.0
      %371 = vmatpush1.msra.mxu0 0.0
      %372 = vmatprep.subr.mxu0 0.0
      %373 = vmatpush1.msra.mxu0 0.0
      %374 = vmatprep.subr.mxu0 0.0
      %375 = vmatpush1.msra.mxu0 0.0
      %376 = vmatprep.subr.mxu0 0.0
      %377 = vmatpush1.msra.mxu0 0.0
      %378 = vmatprep.subr.mxu0 0.0
      %379 = vmatpush1.msra.mxu0 0.0
      %380 = vmatprep.subr.mxu0 0.0
      %v381 = vand.u32 %v181, 4294901760
      %v382 = vsub.f32 %v181, %v381
      %383 = vmatpush1.msra.mxu0 %v382
      %384 = vmatprep.subr.mxu0 0.0
      %v385 = vand.u32 %v180, 4294901760
      %v386 = vsub.f32 %v180, %v385
      %387 = vmatpush1.msra.mxu0 %v386
      %388 = vmatprep.subr.mxu0 0.0
      %v389 = vand.u32 %v179, 4294901760
      %v390 = vsub.f32 %v179, %v389
      %391 = vmatpush1.msra.mxu0 %v390
      %392 = vmatprep.subr.mxu0 0.0
      %v393 = vand.u32 %v178, 4294901760
      %v394 = vsub.f32 %v178, %v393
      %395 = vmatpush1.msra.mxu0 %v394
      %396 = vmatprep.subr.mxu0 0.0
      %397 = vmatpush2.msra.mxu0 0.0
      %398 = vmatprep.subr.mxu0 0.0
      %399 = vmatpush2.msra.mxu0 0.0
      %400 = vmatprep.subr.mxu0 0.0
      %401 = vmatpush2.msra.mxu0 0.0
      %402 = vmatprep.subr.mxu0 0.0
      %403 = vmatpush2.msra.mxu0 0.0
      %404 = vmatprep.subr.mxu0 0.0
      %405 = vmatpush2.msra.mxu0 0.0
      %406 = vmatprep.subr.mxu0 0.0
      %407 = vmatpush2.msra.mxu0 0.0
      %408 = vmatprep.subr.mxu0 0.0
      %409 = vmatpush2.msra.mxu0 0.0
      %410 = vmatprep.subr.mxu0 0.0
      %411 = vmatpush2.msra.mxu0 0.0
      %412 = vmatprep.subr.mxu0 0.0
      %413 = vmatpush2.msra.mxu0 0.0
      %414 = vmatprep.subr.mxu0 0.0
      %415 = vmatpush2.msra.mxu0 0.0
      %416 = vmatprep.subr.mxu0 0.0
      %417 = vmatpush2.msra.mxu0 0.0
      %418 = vmatprep.subr.mxu0 0.0
      %419 = vmatpush2.msra.mxu0 0.0
      %420 = vmatprep.subr.mxu0 0.0
      %421 = vmatpush2.msra.mxu0 0.0
      %422 = vmatprep.subr.mxu0 0.0
      %423 = vmatpush2.msra.mxu0 0.0
      %424 = vmatprep.subr.mxu0 0.0
      %425 = vmatpush2.msra.mxu0 0.0
      %426 = vmatprep.subr.mxu0 0.0
      %427 = vmatpush2.msra.mxu0 0.0
      %428 = vmatprep.mubr.f32.mxu0 0.0
      %v429 = vand.u32 %v184, 4294901760
      %v430 = vsub.f32 %v184, %v429
      %431 = vmatmul.mubr.f32.gmra.mxu0 %v430
      %v432 = vpop.f32.mrf.mxu0
      %v433 = vadd.f32 %v353, %v432
      %v434 = vpop.f32.mrf.mxu0
      %435 = vdwg.mxu0
      %436 = vmatprep.subr.mxu0 0.0
      %437 = vmatpush1.msra.mxu0 0.0
      %438 = vmatprep.subr.mxu0 0.0
      %439 = vmatpush1.msra.mxu0 0.0
      %440 = vmatprep.subr.mxu0 0.0
      %441 = vmatpush1.msra.mxu0 0.0
      %442 = vmatprep.subr.mxu0 0.0
      %443 = vmatpush1.msra.mxu0 0.0
      %444 = vmatprep.subr.mxu0 0.0
      %445 = vmatpush1.msra.mxu0 0.0
      %446 = vmatprep.subr.mxu0 0.0
      %447 = vmatpush1.msra.mxu0 0.0
      %448 = vmatprep.subr.mxu0 0.0
      %449 = vmatpush1.msra.mxu0 0.0
      %450 = vmatprep.subr.mxu0 0.0
      %451 = vmatpush1.msra.mxu0 0.0
      %452 = vmatprep.subr.mxu0 0.0
      %453 = vmatpush1.msra.mxu0 0.0
      %454 = vmatprep.subr.mxu0 0.0
      %455 = vmatpush1.msra.mxu0 0.0
      %456 = vmatprep.subr.mxu0 0.0
      %457 = vmatpush1.msra.mxu0 0.0
      %458 = vmatprep.subr.mxu0 0.0
      %459 = vmatpush1.msra.mxu0 0.0
      %460 = vmatprep.subr.mxu0 0.0
      %v461 = vand.u32 %v181, 4294901760
      %462 = vmatpush1.msra.mxu0 %v461
      %463 = vmatprep.subr.mxu0 0.0
      %v464 = vand.u32 %v180, 4294901760
      %465 = vmatpush1.msra.mxu0 %v464
      %466 = vmatprep.subr.mxu0 0.0
      %v467 = vand.u32 %v179, 4294901760
      %468 = vmatpush1.msra.mxu0 %v467
      %469 = vmatprep.subr.mxu0 0.0
      %v470 = vand.u32 %v178, 4294901760
      %471 = vmatpush1.msra.mxu0 %v470
      %472 = vmatprep.subr.mxu0 0.0
      %473 = vmatpush2.msra.mxu0 0.0
      %474 = vmatprep.subr.mxu0 0.0
      %475 = vmatpush2.msra.mxu0 0.0
      %476 = vmatprep.subr.mxu0 0.0
      %477 = vmatpush2.msra.mxu0 0.0
      %478 = vmatprep.subr.mxu0 0.0
      %479 = vmatpush2.msra.mxu0 0.0
      %480 = vmatprep.subr.mxu0 0.0
      %481 = vmatpush2.msra.mxu0 0.0
      %482 = vmatprep.subr.mxu0 0.0
      %483 = vmatpush2.msra.mxu0 0.0
      %484 = vmatprep.subr.mxu0 0.0
      %485 = vmatpush2.msra.mxu0 0.0
      %486 = vmatprep.subr.mxu0 0.0
      %487 = vmatpush2.msra.mxu0 0.0
      %488 = vmatprep.subr.mxu0 0.0
      %489 = vmatpush2.msra.mxu0 0.0
      %490 = vmatprep.subr.mxu0 0.0
      %491 = vmatpush2.msra.mxu0 0.0
      %492 = vmatprep.subr.mxu0 0.0
      %493 = vmatpush2.msra.mxu0 0.0
      %494 = vmatprep.subr.mxu0 0.0
      %495 = vmatpush2.msra.mxu0 0.0
      %496 = vmatprep.subr.mxu0 0.0
      %497 = vmatpush2.msra.mxu0 0.0
      %498 = vmatprep.subr.mxu0 0.0
      %499 = vmatpush2.msra.mxu0 0.0
      %500 = vmatprep.subr.mxu0 0.0
      %501 = vmatpush2.msra.mxu0 0.0
      %502 = vmatprep.subr.mxu0 0.0
      %503 = vmatpush2.msra.mxu0 0.0
      %504 = vmatprep.mubr.f32.mxu0 0.0
      %v505 = vand.u32 %v184, 4294901760
      %v506 = vsub.f32 %v184, %v505
      %v507 = vand.u32 %v506, 4294901760
      %508 = vmatmul.mubr.f32.gmra.mxu0 %v507
      %v509 = vpop.f32.mrf.mxu0
      %v510 = vadd.f32 %v433, %v509
      %v511 = vpop.f32.mrf.mxu0
      %512 = vdwg.mxu0
      %513 = vmatprep.subr.mxu0 0.0
      %514 = vmatpush1.msra.mxu0 0.0
      %515 = vmatprep.subr.mxu0 0.0
      %516 = vmatpush1.msra.mxu0 0.0
      %517 = vmatprep.subr.mxu0 0.0
      %518 = vmatpush1.msra.mxu0 0.0
      %519 = vmatprep.subr.mxu0 0.0
      %520 = vmatpush1.msra.mxu0 0.0
      %521 = vmatprep.subr.mxu0 0.0
      %522 = vmatpush1.msra.mxu0 0.0
      %523 = vmatprep.subr.mxu0 0.0
      %524 = vmatpush1.msra.mxu0 0.0
      %525 = vmatprep.subr.mxu0 0.0
      %526 = vmatpush1.msra.mxu0 0.0
      %527 = vmatprep.subr.mxu0 0.0
      %528 = vmatpush1.msra.mxu0 0.0
      %529 = vmatprep.subr.mxu0 0.0
      %530 = vmatpush1.msra.mxu0 0.0
      %531 = vmatprep.subr.mxu0 0.0
      %532 = vmatpush1.msra.mxu0 0.0
      %533 = vmatprep.subr.mxu0 0.0
      %534 = vmatpush1.msra.mxu0 0.0
      %535 = vmatprep.subr.mxu0 0.0
      %536 = vmatpush1.msra.mxu0 0.0
      %537 = vmatprep.subr.mxu0 0.0
      %v538 = vand.u32 %v181, 4294901760
      %v539 = vsub.f32 %v181, %v538
      %v540 = vand.u32 %v539, 4294901760
      %541 = vmatpush1.msra.mxu0 %v540
      %542 = vmatprep.subr.mxu0 0.0
      %v543 = vand.u32 %v180, 4294901760
      %v544 = vsub.f32 %v180, %v543
      %v545 = vand.u32 %v544, 4294901760
      %546 = vmatpush1.msra.mxu0 %v545
      %547 = vmatprep.subr.mxu0 0.0
      %v548 = vand.u32 %v179, 4294901760
      %v549 = vsub.f32 %v179, %v548
      %v550 = vand.u32 %v549, 4294901760
      %551 = vmatpush1.msra.mxu0 %v550
      %552 = vmatprep.subr.mxu0 0.0
      %v553 = vand.u32 %v178, 4294901760
      %v554 = vsub.f32 %v178, %v553
      %v555 = vand.u32 %v554, 4294901760
      %556 = vmatpush1.msra.mxu0 %v555
      %557 = vmatprep.subr.mxu0 0.0
      %558 = vmatpush2.msra.mxu0 0.0
      %559 = vmatprep.subr.mxu0 0.0
      %560 = vmatpush2.msra.mxu0 0.0
      %561 = vmatprep.subr.mxu0 0.0
      %562 = vmatpush2.msra.mxu0 0.0
      %563 = vmatprep.subr.mxu0 0.0
      %564 = vmatpush2.msra.mxu0 0.0
      %565 = vmatprep.subr.mxu0 0.0
      %566 = vmatpush2.msra.mxu0 0.0
      %567 = vmatprep.subr.mxu0 0.0
      %568 = vmatpush2.msra.mxu0 0.0
      %569 = vmatprep.subr.mxu0 0.0
      %570 = vmatpush2.msra.mxu0 0.0
      %571 = vmatprep.subr.mxu0 0.0
      %572 = vmatpush2.msra.mxu0 0.0
      %573 = vmatprep.subr.mxu0 0.0
      %574 = vmatpush2.msra.mxu0 0.0
      %575 = vmatprep.subr.mxu0 0.0
      %576 = vmatpush2.msra.mxu0 0.0
      %577 = vmatprep.subr.mxu0 0.0
      %578 = vmatpush2.msra.mxu0 0.0
      %579 = vmatprep.subr.mxu0 0.0
      %580 = vmatpush2.msra.mxu0 0.0
      %581 = vmatprep.subr.mxu0 0.0
      %582 = vmatpush2.msra.mxu0 0.0
      %583 = vmatprep.subr.mxu0 0.0
      %584 = vmatpush2.msra.mxu0 0.0
      %585 = vmatprep.subr.mxu0 0.0
      %586 = vmatpush2.msra.mxu0 0.0
      %587 = vmatprep.subr.mxu0 0.0
      %588 = vmatpush2.msra.mxu0 0.0
      %589 = vmatprep.mubr.f32.mxu0 0.0
      %v590 = vand.u32 %v184, 4294901760
      %591 = vmatmul.mubr.f32.gmra.mxu0 %v590
      %v592 = vpop.f32.mrf.mxu0
      %v593 = vadd.f32 %v510, %v592
      %v594 = vpop.f32.mrf.mxu0
      %595 = vdwg.mxu0
      %596 = vmatprep.subr.mxu0 0.0
      %597 = vmatpush1.msra.mxu0 0.0
      %598 = vmatprep.subr.mxu0 0.0
      %599 = vmatpush1.msra.mxu0 0.0
      %600 = vmatprep.subr.mxu0 0.0
      %601 = vmatpush1.msra.mxu0 0.0
      %602 = vmatprep.subr.mxu0 0.0
      %603 = vmatpush1.msra.mxu0 0.0
      %604 = vmatprep.subr.mxu0 0.0
      %605 = vmatpush1.msra.mxu0 0.0
      %606 = vmatprep.subr.mxu0 0.0
      %607 = vmatpush1.msra.mxu0 0.0
      %608 = vmatprep.subr.mxu0 0.0
      %609 = vmatpush1.msra.mxu0 0.0
      %610 = vmatprep.subr.mxu0 0.0
      %611 = vmatpush1.msra.mxu0 0.0
      %612 = vmatprep.subr.mxu0 0.0
      %613 = vmatpush1.msra.mxu0 0.0
      %614 = vmatprep.subr.mxu0 0.0
      %615 = vmatpush1.msra.mxu0 0.0
      %616 = vmatprep.subr.mxu0 0.0
      %617 = vmatpush1.msra.mxu0 0.0
      %618 = vmatprep.subr.mxu0 0.0
      %619 = vmatpush1.msra.mxu0 0.0
      %620 = vmatprep.subr.mxu0 0.0
      %v621 = vand.u32 %v181, 4294901760
      %622 = vmatpush1.msra.mxu0 %v621
      %623 = vmatprep.subr.mxu0 0.0
      %v624 = vand.u32 %v180, 4294901760
      %625 = vmatpush1.msra.mxu0 %v624
      %626 = vmatprep.subr.mxu0 0.0
      %v627 = vand.u32 %v179, 4294901760
      %628 = vmatpush1.msra.mxu0 %v627
      %629 = vmatprep.subr.mxu0 0.0
      %v630 = vand.u32 %v178, 4294901760
      %631 = vmatpush1.msra.mxu0 %v630
      %632 = vmatprep.subr.mxu0 0.0
      %633 = vmatpush2.msra.mxu0 0.0
      %634 = vmatprep.subr.mxu0 0.0
      %635 = vmatpush2.msra.mxu0 0.0
      %636 = vmatprep.subr.mxu0 0.0
      %637 = vmatpush2.msra.mxu0 0.0
      %638 = vmatprep.subr.mxu0 0.0
      %639 = vmatpush2.msra.mxu0 0.0
      %640 = vmatprep.subr.mxu0 0.0
      %641 = vmatpush2.msra.mxu0 0.0
      %642 = vmatprep.subr.mxu0 0.0
      %643 = vmatpush2.msra.mxu0 0.0
      %644 = vmatprep.subr.mxu0 0.0
      %645 = vmatpush2.msra.mxu0 0.0
      %646 = vmatprep.subr.mxu0 0.0
      %647 = vmatpush2.msra.mxu0 0.0
      %648 = vmatprep.subr.mxu0 0.0
      %649 = vmatpush2.msra.mxu0 0.0
      %650 = vmatprep.subr.mxu0 0.0
      %651 = vmatpush2.msra.mxu0 0.0
      %652 = vmatprep.subr.mxu0 0.0
      %653 = vmatpush2.msra.mxu0 0.0
      %654 = vmatprep.subr.mxu0 0.0
      %655 = vmatpush2.msra.mxu0 0.0
      %656 = vmatprep.subr.mxu0 0.0
      %657 = vmatpush2.msra.mxu0 0.0
      %658 = vmatprep.subr.mxu0 0.0
      %659 = vmatpush2.msra.mxu0 0.0
      %660 = vmatprep.subr.mxu0 0.0
      %661 = vmatpush2.msra.mxu0 0.0
      %662 = vmatprep.subr.mxu0 0.0
      %663 = vmatpush2.msra.mxu0 0.0
      %664 = vmatprep.mubr.f32.mxu0 0.0
      %v665 = vand.u32 %v184, 4294901760
      %666 = vmatmul.mubr.f32.gmra.mxu0 %v665
      %v667 = vpop.f32.mrf.mxu0
      %v668 = vadd.f32 %v593, %v667
      %v669 = vpop.f32.mrf.mxu0
      %670 = vdwg.mxu0
      %vm671 = vcmask 39936
      %672 = vst.msk [vmem:[%s172] sm:$0xff] %vm671, %v668
      %v673 = vsel %vm671, %v668, -inf
      %674 = vmax.xlane.f32.xlu0 %v673
      %v675 = vpop.xlane.xlu0 %674
      %v676 = vlaneseq
      %v677 = vand.u32 %v676, 127
      %vm678 = vcmp.eq.f32.partialorder %v668, %v675
      %v679 = vsel %vm678, %v677, 2147483647
      %v680 = vsel %vm671, %v679, 2147483647
      %v681 = vand.u32 %v680, 65535
      %v682 = vshra.s32 %v680, 16
      %v683 = vcvt.s32.f32 %v681
      %v684 = vcvt.s32.f32 %v682
      %685 = vmin.xlane.f32.xlu0 %v684
      %v686 = vpop.xlane.xlu0 %685
      %vm687 = vcmp.eq.f32.partialorder %v684, %v686
      %v688 = vsel %vm687, %v683, inf
      %689 = vmin.xlane.f32.xlu0 %v688
      %v690 = vpop.xlane.xlu0 %689
      %v691 = vcvt.f32.s32 %v690
      %v692 = vcvt.f32.s32 %v686
      %v693 = vshll.u32 %v692, 16
      %v694 = vadd.s32 %v693, %v691
      %vm695 = vcmask 7168
      %696 = vst.msk [vmem:[%s176] sm:$0xff] %vm695, %v694
      %p697 = scmp.lt.s32.totalorder %s15, 1
      %s698 = scalar_select %p697, %s15, 1
      %s699 = smul.addr %s698, 8
      %s700 = scalar_lea.vmem %s2, %s699
      %p701 = scmp.lt.s32.totalorder %s15, 1
      %s702 = scalar_select %p701, %s15, 1
      %s703 = smul.addr %s702, 8
      %s704 = scalar_lea.vmem %s3, %s703
      // Predicated region
      $region29: #{fewshot_ner_forward.1} parent=27 // pred_check
        %p705 = pneg %p80
      $region30: #{fewshot_ner_forward.1} parent=27 // pred_check_branch
        %707 = sbr.rel (%p705) target = $region32
      $region31: #{fewshot_ner_forward.1} parent=27 // pred_region
        _
      $region32: #{fewshot_ner_forward.1} parent=27 // pred_fallthru
        _
      // Predicated region
      $region33: #{fewshot_ner_forward.1} parent=27 // pred_check
        %p708 = pneg %p106
      $region34: #{fewshot_ner_forward.1} parent=27 // pred_check_branch
        %710 = sbr.rel (%p708) target = $region36
      $region35: #{fewshot_ner_forward.1} parent=27 // pred_region
        _
      $region36: #{fewshot_ner_forward.1} parent=27 // pred_fallthru
        _
    $region28: #{fewshot_ner_forward.1} parent=5 // pred_fallthru
      _
    %p711 = scmp.le.s32.totalorder 2, %s10
    // Predicated region
    $region37: #{fewshot_ner_forward.1} parent=5 // pred_check
      %p712 = pneg %p711
    $region38: #{fewshot_ner_forward.1} parent=5 // pred_check_branch
      %714 = sbr.rel (%p712) target = $region40
    $region39: #{fewshot_ner_forward.1} parent=5 // pred_region
      %s715 = ssub.s32 %s10, 2
      // Predicated region
      $region41: #{fewshot_ner_forward.1} parent=39 // pred_check
        %p716 = pneg %p86
      $region42: #{fewshot_ner_forward.1} parent=39 // pred_check_branch
        %718 = sbr.rel (%p716) target = $region44
      $region43: #{fewshot_ner_forward.1} parent=39 // pred_region
        %p719 = scmp.lt.s32.totalorder %s16, 1
        %s720 = scalar_select %p719, %s16, 1
        %s721 = smul.addr %s720, 8
        %s722 = scalar_lea.vmem %s2, %s721
      $region44: #{fewshot_ner_forward.1} parent=39 // pred_fallthru
        _
      // Predicated region
      $region45: #{fewshot_ner_forward.1} parent=39 // pred_check
        %p723 = pneg %p112
      $region46: #{fewshot_ner_forward.1} parent=39 // pred_check_branch
        %725 = sbr.rel (%p723) target = $region48
      $region47: #{fewshot_ner_forward.1} parent=39 // pred_region
        %p726 = scmp.lt.s32.totalorder %s16, 1
        %s727 = scalar_select %p726, %s16, 1
        %s728 = smul.addr %s727, 8
        %s729 = scalar_lea.vmem %s3, %s728
      $region48: #{fewshot_ner_forward.1} parent=39 // pred_fallthru
        _
    $region40: #{fewshot_ner_forward.1} parent=5 // pred_fallthru
      _
  $region6: #{fewshot_ner_forward.1} parent=0 // loop_footer
    %s14 = sadd.s32 1, %s10
  $region7: #{fewshot_ner_forward.1} parent=0 // loop_footer_branch
    %9 = sbr.rel target = $region3
  $region8: #{fewshot_ner_forward.1} parent=0 // loop_exit
    _

</llo_original>
